<compile_context>
chip_gen: v5e
topology: v5e:2x2
jax: 0.10.0
libtpu: 0.0.40
codegen_flags: <defaults>
</compile_context>

<pallas_src>
import jax
import jax.numpy as jnp
from jax.experimental import pallas as pl
from jax.experimental.pallas import tpu as pltpu


def _round_up(n, m):
    return ((n + m - 1) // m) * m


def _mlp_kernel(xt_ref, w1_ref, b1_ref, w2_ref, b2_ref, w3_ref, b3_ref, o_ref):
    # Transposed layout: features on sublanes, batch on lanes.
    #   xt_ref : (2, TB)
    #   h1     : (H, TB)
    #   o_ref  : (1, TB)   lane-dense output
    xt = xt_ref[...]                                    # (2, TB)
    w1 = w1_ref[...]                                    # (H, 2)  PyTorch (out, in)

    # Layer 1: Linear(2 -> H) as VPU broadcast FMAs (K=2 would waste the MXU).
    h1 = (w1[:, 0:1] * xt[0:1, :]
          + w1[:, 1:2] * xt[1:2, :]
          + b1_ref[...])                                # (H, TB)
    h1 = jnp.maximum(h1, 0.0)

    # Layer 2: Linear(H -> 2); the only real contraction (K=H) -> MXU.
    h2 = jnp.dot(w2_ref[...], h1,
                 preferred_element_type=jnp.float32) + b2_ref[...]   # (2, TB)
    h2 = jnp.maximum(h2, 0.0)

    # Layer 3: Linear(2 -> 1) as VPU FMAs (K=2, N=1).
    w3 = w3_ref[...]                                    # (1, 2)
    z = (w3[0:1, 0:1] * h2[0:1, :]
         + w3[0:1, 1:2] * h2[1:2, :]
         + b3_ref[...])                                 # (1, TB)

    # Sigmoid: exp() goes to the EUP (its own bundle slot); exact divide keeps
    # 1e-5 agreement with the reference.
    o_ref[...] = 1.0 / (1.0 + jnp.exp(-z))


def vanilla_model_forward(x, params, *, tile_b=2048, split_threshold=512,
                          min_grid_steps=2):
    """x: (B, 2) float32. params hold PyTorch-layout (out_features, in_features) weights."""
    B, fin = x.shape
    assert fin == 2
    w1, b1, w2, b2, w3, b3 = (params["w1"], params["b1"], params["w2"],
                              params["b2"], params["w3"], params["b3"])

    # Adaptive grid:
    #  * tiny batch -> one step (per-step overhead dominates; no point padding
    #    the batch 2x just to make a second, empty-ish tile),
    #  * large batch -> big tiles, but at least 2 steps so v7x's two
    #    TensorCores both get work from the "parallel" grid axis.
    if B <= split_threshold:
        n_steps = 1
    else:
        n_steps = max(min_grid_steps, pl.cdiv(B, tile_b))
    tile = _round_up(pl.cdiv(B, n_steps), 128)          # lane axis: 128-multiple
    b_pad = tile * n_steps

    # One transpose + zero-pad in the wrapper -> lane-dense batch axis.
    xt = jnp.pad(x.T, ((0, 0), (0, b_pad - B)))         # (2, b_pad)

    # Weights/biases: whole-array, VMEM-resident once (not pipelined per step).
    def whole():
        return pl.BlockSpec(memory_space=pltpu.MemorySpace.VMEM)

    out_t = pl.pallas_call(
        _mlp_kernel,
        out_shape=jax.ShapeDtypeStruct((1, b_pad), jnp.float32),
        grid_spec=pltpu.PrefetchScalarGridSpec(
            num_scalar_prefetch=0,
            grid=(n_steps,),
            in_specs=[
                pl.BlockSpec((2, tile), lambda i: (0, i)),   # x^T batch tile
                whole(),                                     # w1 (H, 2)
                whole(),                                     # b1 (H, 1)
                whole(),                                     # w2 (2, H)
                whole(),                                     # b2 (2, 1)
                whole(),                                     # w3 (1, 2)
                whole(),                                     # b3 (1, 1)
            ],
            out_specs=pl.BlockSpec((1, tile), lambda i: (0, i)),
        ),
        compiler_params=pltpu.CompilerParams(
            dimension_semantics=("parallel",)),
    )(xt, w1, b1, w2, b2, w3, b3)

    return out_t[0, :B].reshape(B, 1)


def init_params(key, num_hidden):
    """Deterministic synthetic init; PyTorch nn.Linear layout (out_features, in_features)."""
    k1, k2, k3, k4, k5, k6 = jax.random.split(key, 6)
    w1 = jax.random.normal(k1, (num_hidden, 2), jnp.float32) * 0.5
    b1 = jax.random.normal(k2, (num_hidden, 1), jnp.float32) * 0.1
    w2 = jax.random.normal(k3, (2, num_hidden), jnp.float32) * 0.5
    b2 = jax.random.normal(k4, (2, 1), jnp.float32) * 0.1
    w3 = jax.random.normal(k5, (1, 2), jnp.float32) * 0.5
    b3 = jax.random.normal(k6, (1, 1), jnp.float32) * 0.1
    return dict(w1=w1, b1=b1, w2=w2, b2=b2, w3=w3, b3=b3)


def reference_forward(x, p):
    hp = jax.lax.Precision.HIGHEST
    h1 = jnp.maximum(jnp.dot(x, p["w1"].T, precision=hp) + p["b1"].T, 0.0)
    h2 = jnp.maximum(jnp.dot(h1, p["w2"].T, precision=hp) + p["b2"].T, 0.0)
    z = jnp.dot(h2, p["w3"].T, precision=hp) + p["b3"].T
    return jax.nn.sigmoid(z)


if __name__ == "__main__":
    num_hidden = 32
    batch = 16

    key = jax.random.PRNGKey(0)
    kx, kp = jax.random.split(key)
    x = jax.random.normal(kx, (batch, 2), jnp.float32)
    params = init_params(kp, num_hidden)

    out = vanilla_model_forward(x, params)
    out = jax.block_until_ready(out)

    ref = reference_forward(x, params)
    assert out.shape == (batch, 1)
    assert jnp.allclose(out, ref, atol=1e-5, rtol=1e-5), "mismatch vs reference"

    print("KERNEL_OK")
</pallas_src>

<mosaic_0001>
module attributes {stable_mosaic.version = 11 : i64} {
  func.func @_mlp_kernel(%arg0: i32, %arg1: memref<2x128xf32, #tpu.memory_space<vmem>>, %arg2: memref<32x2xf32, #tpu.memory_space<vmem>>, %arg3: memref<32x1xf32, #tpu.memory_space<vmem>>, %arg4: memref<2x32xf32, #tpu.memory_space<vmem>>, %arg5: memref<2x1xf32, #tpu.memory_space<vmem>>, %arg6: memref<1x2xf32, #tpu.memory_space<vmem>>, %arg7: memref<1x1xf32, #tpu.memory_space<vmem>>, %arg8: memref<1x128xf32, #tpu.memory_space<vmem>>) attributes {dimension_semantics = [#tpu.dimension_semantics<parallel>], iteration_bounds = array<i64: 1>, scalar_prefetch = 0 : i64, scratch_operands = 0 : i64, tpu.core_type = #tpu.core_type<tc>, window_params = [{transform_indices = @transform_0, window_bounds = array<i64: 2, 128>}, {pipeline_mode = #tpu.pipeline_mode<synchronous>, transform_indices = @transform_1, window_bounds = array<i64: 32, 2>}, {pipeline_mode = #tpu.pipeline_mode<synchronous>, transform_indices = @transform_2, window_bounds = array<i64: 32, 1>}, {pipeline_mode = #tpu.pipeline_mode<synchronous>, transform_indices = @transform_3, window_bounds = array<i64: 2, 32>}, {pipeline_mode = #tpu.pipeline_mode<synchronous>, transform_indices = @transform_4, window_bounds = array<i64: 2, 1>}, {pipeline_mode = #tpu.pipeline_mode<synchronous>, transform_indices = @transform_5, window_bounds = array<i64: 1, 2>}, {pipeline_mode = #tpu.pipeline_mode<synchronous>, transform_indices = @transform_6, window_bounds = array<i64: 1, 1>}, {transform_indices = @transform_7, window_bounds = array<i64: 1, 128>}]} {
    %c0 = arith.constant 0 : index
    %c0_0 = arith.constant 0 : index
    %0 = vector.load %arg1[%c0, %c0_0] : memref<2x128xf32, #tpu.memory_space<vmem>>, vector<2x128xf32>
    %c0_1 = arith.constant 0 : index
    %c0_2 = arith.constant 0 : index
    %1 = vector.load %arg2[%c0_1, %c0_2] : memref<32x2xf32, #tpu.memory_space<vmem>>, vector<32x2xf32>
    %2 = vector.extract_strided_slice %1 {offsets = [0, 0], sizes = [32, 1], strides = [1, 1]} : vector<32x2xf32> to vector<32x1xf32>
    %3 = vector.extract_strided_slice %0 {offsets = [0, 0], sizes = [1, 128], strides = [1, 1]} : vector<2x128xf32> to vector<1x128xf32>
    %4 = vector.broadcast %2 : vector<32x1xf32> to vector<32x128xf32>
    %5 = vector.broadcast %3 : vector<1x128xf32> to vector<32x128xf32>
    %6 = arith.mulf %4, %5 : vector<32x128xf32>
    %7 = vector.extract_strided_slice %1 {offsets = [0, 1], sizes = [32, 1], strides = [1, 1]} : vector<32x2xf32> to vector<32x1xf32>
    %8 = vector.extract_strided_slice %0 {offsets = [1, 0], sizes = [1, 128], strides = [1, 1]} : vector<2x128xf32> to vector<1x128xf32>
    %9 = vector.broadcast %7 : vector<32x1xf32> to vector<32x128xf32>
    %10 = vector.broadcast %8 : vector<1x128xf32> to vector<32x128xf32>
    %11 = arith.mulf %9, %10 : vector<32x128xf32>
    %12 = arith.addf %6, %11 : vector<32x128xf32>
    %c0_3 = arith.constant 0 : index
    %c0_4 = arith.constant 0 : index
    %13 = vector.load %arg3[%c0_3, %c0_4] : memref<32x1xf32, #tpu.memory_space<vmem>>, vector<32x1xf32>
    %14 = vector.broadcast %13 : vector<32x1xf32> to vector<32x128xf32>
    %15 = arith.addf %12, %14 : vector<32x128xf32>
    %cst = arith.constant 0.000000e+00 : f32
    %16 = vector.broadcast %cst : f32 to vector<32x128xf32>
    %17 = arith.maximumf %15, %16 : vector<32x128xf32>
    %c0_5 = arith.constant 0 : index
    %c0_6 = arith.constant 0 : index
    %18 = vector.load %arg4[%c0_5, %c0_6] : memref<2x32xf32, #tpu.memory_space<vmem>>, vector<2x32xf32>
    %cst_7 = arith.constant dense<0.000000e+00> : vector<2x128xf32>
    %19 = tpu.matmul %18, %17, %cst_7 {dimension_numbers = #tpu.dot_dimension_numbers<[1], [0], [0], [1], [0, 0, 1, 1], [], []>} : vector<2x32xf32>, vector<32x128xf32>, vector<2x128xf32> -> vector<2x128xf32>
    %c0_8 = arith.constant 0 : index
    %c0_9 = arith.constant 0 : index
    %20 = vector.load %arg5[%c0_8, %c0_9] : memref<2x1xf32, #tpu.memory_space<vmem>>, vector<2x1xf32>
    %21 = vector.broadcast %20 : vector<2x1xf32> to vector<2x128xf32>
    %22 = arith.addf %19, %21 : vector<2x128xf32>
    %cst_10 = arith.constant 0.000000e+00 : f32
    %23 = vector.broadcast %cst_10 : f32 to vector<2x128xf32>
    %24 = arith.maximumf %22, %23 : vector<2x128xf32>
    %c0_11 = arith.constant 0 : index
    %c0_12 = arith.constant 0 : index
    %25 = vector.load %arg6[%c0_11, %c0_12] : memref<1x2xf32, #tpu.memory_space<vmem>>, vector<1x2xf32>
    %26 = vector.extract_strided_slice %25 {offsets = [0, 0], sizes = [1, 1], strides = [1, 1]} : vector<1x2xf32> to vector<1x1xf32>
    %27 = vector.extract_strided_slice %24 {offsets = [0, 0], sizes = [1, 128], strides = [1, 1]} : vector<2x128xf32> to vector<1x128xf32>
    %28 = vector.broadcast %26 : vector<1x1xf32> to vector<1x128xf32>
    %29 = arith.mulf %28, %27 : vector<1x128xf32>
    %30 = vector.extract_strided_slice %25 {offsets = [0, 1], sizes = [1, 1], strides = [1, 1]} : vector<1x2xf32> to vector<1x1xf32>
    %31 = vector.extract_strided_slice %24 {offsets = [1, 0], sizes = [1, 128], strides = [1, 1]} : vector<2x128xf32> to vector<1x128xf32>
    %32 = vector.broadcast %30 : vector<1x1xf32> to vector<1x128xf32>
    %33 = arith.mulf %32, %31 : vector<1x128xf32>
    %34 = arith.addf %29, %33 : vector<1x128xf32>
    %c0_13 = arith.constant 0 : index
    %c0_14 = arith.constant 0 : index
    %35 = vector.load %arg7[%c0_13, %c0_14] : memref<1x1xf32, #tpu.memory_space<vmem>>, vector<1x1xf32>
    %36 = vector.broadcast %35 : vector<1x1xf32> to vector<1x128xf32>
    %37 = arith.addf %34, %36 : vector<1x128xf32>
    %cst_15 = arith.constant 0.000000e+00 : f32
    %38 = vector.broadcast %cst_15 : f32 to vector<1x128xf32>
    %39 = arith.subf %38, %37 : vector<1x128xf32>
    %40 = math.exp %39 : vector<1x128xf32>
    %cst_16 = arith.constant 1.000000e+00 : f32
    %41 = vector.broadcast %cst_16 : f32 to vector<1x128xf32>
    %42 = arith.addf %41, %40 : vector<1x128xf32>
    %cst_17 = arith.constant 1.000000e+00 : f32
    %43 = vector.broadcast %cst_17 : f32 to vector<1x128xf32>
    %44 = arith.divf %43, %42 : vector<1x128xf32>
    %c0_18 = arith.constant 0 : index
    %c0_19 = arith.constant 0 : index
    %45 = vector.load %arg8[%c0_18, %c0_19] : memref<1x128xf32, #tpu.memory_space<vmem>>, vector<1x128xf32>
    tpu.vector_store %arg8[%c0_18, %c0_19], %44 {strides = array<i32>} : memref<1x128xf32, #tpu.memory_space<vmem>>, vector<1x128xf32>,
    return
  }
  func.func @transform_0(%arg0: i32) -> (i32, i32) {
    %c0_i32 = arith.constant 0 : i32
    %c0_i32_0 = arith.constant 0 : i32
    return %c0_i32, %arg0 : i32, i32
  }
  func.func @transform_1(%arg0: i32) -> (i32, i32) {
    %c0_i32 = arith.constant 0 : i32
    %c0_i32_0 = arith.constant 0 : i32
    %c0_i32_1 = arith.constant 0 : i32
    return %c0_i32, %c0_i32_0 : i32, i32
  }
  func.func @transform_2(%arg0: i32) -> (i32, i32) {
    %c0_i32 = arith.constant 0 : i32
    %c0_i32_0 = arith.constant 0 : i32
    %c0_i32_1 = arith.constant 0 : i32
    return %c0_i32, %c0_i32_0 : i32, i32
  }
  func.func @transform_3(%arg0: i32) -> (i32, i32) {
    %c0_i32 = arith.constant 0 : i32
    %c0_i32_0 = arith.constant 0 : i32
    %c0_i32_1 = arith.constant 0 : i32
    return %c0_i32, %c0_i32_0 : i32, i32
  }
  func.func @transform_4(%arg0: i32) -> (i32, i32) {
    %c0_i32 = arith.constant 0 : i32
    %c0_i32_0 = arith.constant 0 : i32
    %c0_i32_1 = arith.constant 0 : i32
    return %c0_i32, %c0_i32_0 : i32, i32
  }
  func.func @transform_5(%arg0: i32) -> (i32, i32) {
    %c0_i32 = arith.constant 0 : i32
    %c0_i32_0 = arith.constant 0 : i32
    %c0_i32_1 = arith.constant 0 : i32
    return %c0_i32, %c0_i32_0 : i32, i32
  }
  func.func @transform_6(%arg0: i32) -> (i32, i32) {
    %c0_i32 = arith.constant 0 : i32
    %c0_i32_0 = arith.constant 0 : i32
    %c0_i32_1 = arith.constant 0 : i32
    return %c0_i32, %c0_i32_0 : i32, i32
  }
  func.func @transform_7(%arg0: i32) -> (i32, i32) {
    %c0_i32 = arith.constant 0 : i32
    %c0_i32_0 = arith.constant 0 : i32
    return %c0_i32, %arg0 : i32, i32
  }
}

</mosaic_0001>

<llo_original>
// kernel: tpu_custom_call.1
$region0: #{tpu_custom_call.1}
  #allocation0 [shape = 'u32[]', space=smem, size = 0x4, offset = 0x4, fixed_abs, tag = 'smem constant byte address 0x4 - core index']
  #allocation1 [shape = 'u32[72,128]{1,0:T(1,128)}', space=vmem, size = 0x9000, scoped, tag = 'internal scratch']
  #allocation2 [shape = 'f32[1,1]{1,0:T(1,128)S(1)}', space=vmem, size = 0x200, scoped, tag = 'scoped memory for tpu_custom_call.1']
  %s0 = inlined_call_operand.vmem [shape: f32[2,128], index: 0, kind: input, shape index: {}]
  %s1 = inlined_call_operand.vmem [shape: f32[32,2], index: 1, kind: input, shape index: {}]
  %s2 = inlined_call_operand.vmem [shape: f32[32,1], index: 2, kind: input, shape index: {}]
  %s3 = inlined_call_operand.vmem [shape: f32[2,32], index: 3, kind: input, shape index: {}]
  %s4 = inlined_call_operand.vmem [shape: f32[2,1], index: 4, kind: input, shape index: {}]
  %s5 = inlined_call_operand.vmem [shape: f32[1,2], index: 5, kind: input, shape index: {}]
  %s6 = inlined_call_operand.<no memory space> [shape: f32[1,1], index: 6, kind: input, shape index: {}]
  %s7 = inlined_call_operand.hbm [shape: f32[1,128], index: 7, kind: output, shape index: {}]
  %s8 = sld [smem:[#allocation0]]
  $region38: #{tpu_custom_call.1} parent=0
    _
  %s10 = ssub.s32 1, %s8
  %s11 = scalar_select 0, %s10, %s8
  %v12 = vstv %s6
  %13 = vst [vmem:[#allocation2] sm:$0x1] %v12
  $region1: #{tpu_custom_call.1} parent=0
    #allocation3 [shape = 'u8[512]{0}', space=vmem, size = 0x400, scoped, tag = 'output window, operand 0, single buffered']
    #allocation4 [shape = 's32[1]{0}', space=sflag, size = 0x4, scoped, tag = 'scoped memory for tpu_custom_call.1']
    %14 = vsyncpa [#allocation4], 0
    // Predicated region
    $region2: #{tpu_custom_call.1} parent=1 // pred_check
      _
    $region3: #{tpu_custom_call.1} parent=1 // pred_check_branch
      %16 = sbr.rel (0) target = $region5
    $region4: #{tpu_custom_call.1} parent=1 // pred_region
      _
    $region5: #{tpu_custom_call.1} parent=1 // pred_fallthru
      _
    // Predicated region
    $region6: #{tpu_custom_call.1} parent=1 // pred_check
      _
    $region7: #{tpu_custom_call.1} parent=1 // pred_check_branch
      %18 = sbr.rel (0) target = $region9
    $region8: #{tpu_custom_call.1} parent=1 // pred_region
      _
    $region9: #{tpu_custom_call.1} parent=1 // pred_fallthru
      _
    // Predicated region
    $region10: #{tpu_custom_call.1} parent=1 // pred_check
      _
    $region11: #{tpu_custom_call.1} parent=1 // pred_check_branch
      %20 = sbr.rel (0) target = $region13
    $region12: #{tpu_custom_call.1} parent=1 // pred_region
      _
    $region13: #{tpu_custom_call.1} parent=1 // pred_fallthru
      _
    // Predicated region
    $region14: #{tpu_custom_call.1} parent=1 // pred_check
      _
    $region15: #{tpu_custom_call.1} parent=1 // pred_check_branch
      %22 = sbr.rel (0) target = $region17
    $region16: #{tpu_custom_call.1} parent=1 // pred_region
      _
    $region17: #{tpu_custom_call.1} parent=1 // pred_fallthru
      _
    // Predicated region
    $region18: #{tpu_custom_call.1} parent=1 // pred_check
      _
    $region19: #{tpu_custom_call.1} parent=1 // pred_check_branch
      %24 = sbr.rel (0) target = $region21
    $region20: #{tpu_custom_call.1} parent=1 // pred_region
      _
    $region21: #{tpu_custom_call.1} parent=1 // pred_fallthru
      _
    // Predicated region
    $region22: #{tpu_custom_call.1} parent=1 // pred_check
      _
    $region23: #{tpu_custom_call.1} parent=1 // pred_check_branch
      %26 = sbr.rel (0) target = $region25
    $region24: #{tpu_custom_call.1} parent=1 // pred_region
      _
    $region25: #{tpu_custom_call.1} parent=1 // pred_fallthru
      _
    // Predicated region
    $region26: #{tpu_custom_call.1} parent=1 // pred_check
      _
    $region27: #{tpu_custom_call.1} parent=1 // pred_check_branch
      %28 = sbr.rel (0) target = $region29
    $region28: #{tpu_custom_call.1} parent=1 // pred_region
      _
    $region29: #{tpu_custom_call.1} parent=1 // pred_fallthru
      _
    %v29 = vld [vmem:[%s0] sm:$0x3]
    %v30 = vld [vmem:[%s1] sm:$0xff]
    %v31 = vld [vmem:[%s1 + $0x8] sm:$0xff]
    %v32 = vld [vmem:[%s1 + $0x10] sm:$0xff]
    %v33 = vld [vmem:[%s1 + $0x18] sm:$0xff]
    %35 = vset.pattern.permute.xlu0 0
    %36 = vperm.xlu0 %35, %v30
    %v37 = vpop.permute.xlu0 %36
    %40 = vset.pattern.permute.xlu0 0
    %41 = vperm.xlu0 %40, %v31
    %v42 = vpop.permute.xlu0 %41
    %45 = vset.pattern.permute.xlu0 0
    %46 = vperm.xlu0 %45, %v32
    %v47 = vpop.permute.xlu0 %46
    %50 = vset.pattern.permute.xlu0 0
    %51 = vperm.xlu0 %50, %v33
    %v52 = vpop.permute.xlu0 %51
    %v54 = vperm.slane %v29, 0
    %v55 = vmul.f32 %v37, %v54
    %v56 = vmul.f32 %v42, %v54
    %v57 = vmul.f32 %v47, %v54
    %v58 = vmul.f32 %v52, %v54
    %59 = vset.pattern.permute.xlu0 1
    %60 = vperm.xlu0 %59, %v30
    %v61 = vpop.permute.xlu0 %60
    %63 = vset.pattern.permute.xlu0 1
    %64 = vperm.xlu0 %63, %v31
    %v65 = vpop.permute.xlu0 %64
    %67 = vset.pattern.permute.xlu0 1
    %68 = vperm.xlu0 %67, %v32
    %v69 = vpop.permute.xlu0 %68
    %71 = vset.pattern.permute.xlu0 1
    %72 = vperm.xlu0 %71, %v33
    %v73 = vpop.permute.xlu0 %72
    %v75 = vperm.slane %v29, 1
    %v76 = vmul.f32 %v61, %v75
    %v77 = vmul.f32 %v65, %v75
    %v78 = vmul.f32 %v69, %v75
    %v79 = vmul.f32 %v73, %v75
    %v80 = vadd.f32 %v55, %v76
    %v81 = vadd.f32 %v56, %v77
    %v82 = vadd.f32 %v57, %v78
    %v83 = vadd.f32 %v58, %v79
    %v84 = vld [vmem:[%s2] sm:$0xff]
    %v85 = vld [vmem:[%s2 + $0x8] sm:$0xff]
    %v86 = vld [vmem:[%s2 + $0x10] sm:$0xff]
    %v87 = vld [vmem:[%s2 + $0x18] sm:$0xff]
    %89 = vset.pattern.permute.xlu0 0
    %90 = vperm.xlu0 %89, %v84
    %v91 = vpop.permute.xlu0 %90
    %94 = vset.pattern.permute.xlu0 0
    %95 = vperm.xlu0 %94, %v85
    %v96 = vpop.permute.xlu0 %95
    %99 = vset.pattern.permute.xlu0 0
    %100 = vperm.xlu0 %99, %v86
    %v101 = vpop.permute.xlu0 %100
    %104 = vset.pattern.permute.xlu0 0
    %105 = vperm.xlu0 %104, %v87
    %v106 = vpop.permute.xlu0 %105
    %v108 = vadd.f32 %v80, %v91
    %v109 = vadd.f32 %v81, %v96
    %v110 = vadd.f32 %v82, %v101
    %v111 = vadd.f32 %v83, %v106
    %v112 = vmax.f32 %v108, 0.0
    %v113 = vmax.f32 %v109, 0.0
    %v114 = vmax.f32 %v110, 0.0
    %v115 = vmax.f32 %v111, 0.0
    %v116 = vld [vmem:[%s3] sm:$0x3]
    %v117 = vld [vmem:[%s4] sm:$0x3]
    %119 = vset.pattern.permute.xlu0 0
    %120 = vperm.xlu0 %119, %v117
    %v121 = vpop.permute.xlu0 %120
    %vm123 = vcmask 261120
    %v125 = vsel %vm123, %v116, 0
    %127 = vmatpush.msra.mxu0 0.0
    %128 = vmatpush.msra.mxu0 0.0
    %129 = vmatpush.msra.mxu0 0.0
    %130 = vmatpush.msra.mxu0 0.0
    %131 = vmatpush.msra.mxu0 0.0
    %132 = vmatpush.msra.mxu0 0.0
    %133 = vmatpush.msra.mxu0 0.0
    %134 = vmatpush.msra.mxu0 0.0
    %135 = vmatpush.msra.mxu0 0.0
    %136 = vmatpush.msra.mxu0 0.0
    %137 = vmatpush.msra.mxu0 0.0
    %138 = vmatpush.msra.mxu0 0.0
    %139 = vmatpush.msra.mxu0 %v115
    %140 = vmatpush.msra.mxu0 %v114
    %141 = vmatpush.msra.mxu0 %v113
    %142 = vmatpush.msra.mxu0 %v112
    %143 = vmatmul.f32.gmra.mxu0 %v125
    %v144 = vpop.f32.mrf.mxu0
    %v145 = vadd.f32 %v121, %v144
    %146 = vdwg.mxu0
    %v147 = vmax.f32 %v145, 0.0
    %v148 = vld [vmem:[%s5] sm:$0x1]
    %150 = vset.pattern.permute.xlu0 0
    %151 = vperm.xlu0 %150, %v148
    %v152 = vpop.permute.xlu0 %151
    %v154 = vperm.slane %v152, 0
    %v155 = vmul.f32 %v154, %v147
    %156 = vset.pattern.permute.xlu0 1
    %157 = vperm.xlu0 %156, %v148
    %v158 = vpop.permute.xlu0 %157
    %v160 = vperm.slane %v158, 0
    %v161 = vmul.f32 %v160, %v147
    %v163 = vrot.slane %v161, 1
    %v165 = vadd.f32 %v155, %v163
    %v166 = vld [vmem:[#allocation2] sm:$0x1]
    %168 = vset.pattern.permute.xlu0 0
    %169 = vperm.xlu0 %168, %v166
    %v170 = vpop.permute.xlu0 %169
    %v172 = vperm.slane %v170, 0
    %v173 = vadd.f32 %v165, %v172
    %v174 = vsub.f32 0.0, %v173
    %v175 = vmul.f32 %v174, 1.442695
    %v176 = vpow.pop %v175
    %v177 = vadd.f32 %v176, 1.0
    %v178 = vrcp.pop %v177
    %v179 = vmul.f32 %v177, %v178
    %v180 = vsub.f32 1.0, %v179
    %v181 = vmul.f32 %v178, %v180
    %v182 = vadd.f32 %v178, %v181
    %vm183 = vweird.f32 %v177
    %vm184 = vweird.f32 %v178
    %vm185 = vmor %vm183, %vm184
    %v186 = vsel %vm185, %v178, %v182
    %v187 = vand.u32 2147483647, %v177
    %vm188 = vcmp.eq.f32.partialorder %v187, 8.507059e+37
    %v189 = vand.u32 %v177, 2147483648
    %v190 = vor.u32 1.1754944e-38, %v189
    %v191 = vsel %vm188, %v190, %v186
    %v192 = vmul.f32 1.0, %v191
    %193 = vst [vmem:[#allocation3] sm:$0x1] %v192
    // Predicated region
    $region30: #{tpu_custom_call.1} parent=1 // pred_check
      _
    $region31: #{tpu_custom_call.1} parent=1 // pred_check_branch
      %195 = sbr.rel (0) target = $region33
    $region32: #{tpu_custom_call.1} parent=1 // pred_region
      %197 = vsyncadd [#allocation4], 0
      %s199 = sshll.u32 [#allocation3], 4
      %s200 = int_to_ptr.vmem [resolvable:$true] %s199
      %s201 = sshll.u32 %s7, 4
      %s202 = int_to_ptr.hbm [resolvable:$true] %s201
      %204 = dma.vmem_to_hbm [thread:$0]  %s200, 16, %s202, [#allocation4]
    $region33: #{tpu_custom_call.1} parent=1 // pred_fallthru
      _
    // Predicated region
    $region34: #{tpu_custom_call.1} parent=1 // pred_check
      _
    $region35: #{tpu_custom_call.1} parent=1 // pred_check_branch
      %206 = sbr.rel (0) target = $region37
    $region36: #{tpu_custom_call.1} parent=1 // pred_region
      %208 = dma.done [#allocation4], 16
    $region37: #{tpu_custom_call.1} parent=1 // pred_fallthru
      _
    %209 = vsyncpa [#allocation4], 1

</llo_original>
